<compile_context>
chip_gen: v7x
topology: tpu7x:2x2x1
jax: 0.10.0
libtpu: 0.0.40
codegen_flags: <defaults>
</compile_context>

<pallas_src>
import functools

import jax
import jax.numpy as jnp
from jax import lax
from jax.experimental import pallas as pl
from jax.experimental.pallas import tpu as pltpu


def _round_down(v, m):
    return max(m, (v // m) * m)


def _round_up(v, m):
    return ((v + m - 1) // m) * m


def _choose_layout(R, W, s):
    """Choose the static gather/store plan.

    Returns (k, wc, n_wchunks, n_rep, Lg):
      k          rows folded into the lane dim (narrow path; 1 on wide path)
      wc         input lanes per matmul (gather-matrix row count)
      n_wchunks  static width chunks per row (wide path only)
      n_rep      height replicas realized by replicated stores (s or 1)
      Lg         output lanes produced per matmul (gather-matrix column count)
    """
    if (s * W) % 128 == 0:
        # Wide path: height replication via lane-dense stores; width chunking
        # bounds the MXU reduction depth at 128 when 128 | W.
        wc = 128 if (W % 128 == 0) else W
        return 1, wc, W // wc, s, wc * s

    # Narrow path: fold k rows so the output lane width is 128-aligned
    # (lane-dense vst on the dominant, s^2-larger output side) while keeping
    # the matmul reduction depth L = k*W <= 128.
    k = None
    for cand in range(1, 129):
        if R % cand:
            continue
        lq = cand * W * s * s
        if lq % 128 == 0 and lq <= 512 and cand * W <= 128:
            k = cand
            break
    if k is None:
        # No aligned option: fall back to the widest sub-2-vreg output
        # (masked partial stores, still correct).
        k = 1
        for cand in range(1, 129):
            if R % cand == 0 and cand * W * s * s <= 256:
                k = cand
    L = k * W
    return k, L, 1, 1, L * s * s


def _upsample_kernel(x_ref, g_ref, o_ref, *, rc, num_chunks, wc, n_wchunks,
                     n_rep, lg, out_rep_stride, out_chunk_stride, precision,
                     unroll):
    """x_ref: (tb, L); g_ref: (wc, lg) 0/1 gather matrix; o_ref: (tb, Lq).

    For each row chunk: y = x_chunk[:, t*wc:(t+1)*wc] @ G (each output lane
    copies exactly one input lane, coefficient 1.0 -> exact nearest-neighbour
    interleave), then y is stored once per height replica `a` at the static
    lane offset a*out_rep_stride + t*out_chunk_stride (128-aligned on the wide
    path, full-width on the narrow path).
    """
    gm = g_ref[...]  # constant block: loaded once, stays in vregs/VMEM

    def body(c, carry):
        r0 = pl.multiple_of(c * rc, rc)
        for t in range(n_wchunks):                       # static
            xc = x_ref[pl.ds(r0, rc), pl.ds(t * wc, wc)].astype(gm.dtype)
            yc = jnp.dot(
                xc, gm,
                preferred_element_type=jnp.float32,
                precision=precision,
            ).astype(o_ref.dtype)
            for a in range(n_rep):                       # static: replicas are copies
                off = a * out_rep_stride + t * out_chunk_stride
                o_ref[pl.ds(r0, rc), pl.ds(off, lg)] = yc
        return carry

    lax.fori_loop(0, num_chunks, body, None, unroll=unroll)


def upsample_nearest(x, scale_factor=2):
    """F.interpolate(x, scale_factor=s, mode='nearest') for NCHW, integer s."""
    s = int(scale_factor)
    N, C, H, W = x.shape
    if s == 1:
        return x

    dt = x.dtype
    if jnp.issubdtype(dt, jnp.floating):
        cdtype = dt
    elif dt.kind in ("i", "u") and dt.itemsize == 1:
        cdtype = jnp.bfloat16          # exact: |v| <= 255 fits bf16's mantissa
    elif dt.kind in ("i", "u") and dt.itemsize == 2:
        cdtype = jnp.float32           # exact: |v| < 2**24
    else:
        # TODO(synk): int32/int64/bool inputs — a 0/1 matmul gather is not
        # guaranteed exact past 2**24, fall back to the XLA repeat path.
        return jnp.repeat(jnp.repeat(x, s, axis=2), s, axis=3)

    # HIGHEST keeps f32 values bit-exact through the MXU; DEFAULT is already
    # exact for bf16/f16 (products accumulate in f32) and avoids multi-pass.
    precision = (lax.Precision.HIGHEST if cdtype == jnp.float32
                 else lax.Precision.DEFAULT)

    R = N * C * H                                   # flattened image rows
    k, wc, n_wchunks, n_rep, Lg = _choose_layout(R, W, s)
    L = k * W                                       # kernel input lane width
    Lq = L * s * s                                  # kernel output lane width
    R2 = R // k                                     # number of superrows

    x2 = x.reshape(R2, L)                           # free metadata reshape

    # Constant 0/1 gather matrix (now only wc*Lg*esize ~ tens of KiB):
    #   narrow path: src(q) = (q // (s*s*W))*W + (q % (s*W)) // s
    #   wide path (width-repeat only): src(q) = q // s
    q = jnp.arange(Lg, dtype=jnp.int32)
    if n_rep == 1:
        src = (q // (s * s * W)) * W + (q % (s * W)) // s
    else:
        src = q // s
    gmat = (src[None, :] == jnp.arange(wc, dtype=jnp.int32)[:, None]).astype(cdtype)

    esize = dt.itemsize
    sub_mult = max(8, 32 // esize)      # sublane multiple: 8 f32, 16 bf16, 32 i8

    # Rows per in-kernel chunk: keep the f32 matmul result <= ~128 KiB, stay
    # within the (padded) row count, and leave room for >= 4 grid blocks.
    rc = _round_down(min(256, max(sub_mult, (128 * 1024) // (Lg * 4))), sub_mult)
    rc = min(rc, _round_up(R2, sub_mult))
    rc = min(rc, max(sub_mult, _round_down(max(R2 // 4, sub_mult), sub_mult)))

    # Scoped-VMEM limit (generation-aware): leave headroom under the physical
    # capacity (64 MiB/TC on v7x, 128 MiB on v5e/v6e).
    try:
        vmem_phys = int(pltpu.get_tpu_info().vmem_capacity_bytes)
    except Exception:
        vmem_phys = 64 << 20
    vmem_limit = max(32 << 20, min(vmem_phys - (16 << 20), 100 << 20))

    # In+out bytes per grid block: large double-buffered blocks amortize the
    # ~0.35us per-step overhead and keep DMAs long (measured 63% -> 85% of HBM
    # roofline), while 2x(in+out) stays well under the VMEM limit.
    budget = min(20 << 20, vmem_limit // 4)
    bytes_per_row = (L + Lq) * esize

    total_chunks = pl.cdiv(R2, rc)
    nb = min(total_chunks, max(4, pl.cdiv(R2 * bytes_per_row, budget)))
    num_chunks = pl.cdiv(total_chunks, nb)          # row chunks per grid block
    tb = rc * num_chunks                            # rows per grid block
    grid = (pl.cdiv(R2, tb),)

    if num_chunks <= 8:
        unroll = True                               # full unroll: LLO overlap
    elif num_chunks % 4 == 0:
        unroll = 4
    elif num_chunks % 2 == 0:
        unroll = 2
    else:
        unroll = 1

    kernel = functools.partial(
        _upsample_kernel,
        rc=rc, num_chunks=num_chunks, wc=wc, n_wchunks=n_wchunks, n_rep=n_rep,
        lg=Lg, out_rep_stride=s * W, out_chunk_stride=wc * s,
        precision=precision, unroll=unroll,
    )

    out2 = pl.pallas_call(
        kernel,
        out_shape=jax.ShapeDtypeStruct((R2, Lq), dt),
        grid=grid,
        in_specs=[
            pl.BlockSpec((tb, L), lambda i: (i, 0)),
            # Constant gather block: block index never changes so it is DMA'd
            # once and stays resident (tiny after factorization, so extra
            # pipeline buffers cost nothing).
            pl.BlockSpec((wc, Lg), lambda i: (0, 0)),
        ],
        # NOTE: when tb does not divide R2 the last block's padded rows compute
        # on unspecified data; Pallas drops their writeback, so this is safe.
        out_specs=pl.BlockSpec((tb, Lq), lambda i: (i, 0)),
        compiler_params=pltpu.CompilerParams(
            dimension_semantics=("parallel",),      # v7x: shard blocks across TCs
            vmem_limit_bytes=int(vmem_limit),
        ),
    )(x2, gmat)

    # (R2, k*s*s*W) is already the contiguous layout of (N, C, H*s, W*s):
    # element (g, j*s*s*W + a*s*W + w*s + b) == out[n, c, (g*k+j)*s+a, w*s+b],
    # so the trailing reshape is a free metadata change.
    return out2.reshape(N, C, H * s, W * s)


class Upsample:
    """Mirror of the PyTorch Upsample module (nearest mode, integer scale)."""

    def __init__(self, size=None, scale_factor=None, mode="nearest", align_corners=None):
        # TODO(synk): only mode='nearest' with an integer scale_factor is
        # implemented; size=, bilinear/bicubic and non-integer scales are not.
        self.size = size
        self.scale_factor = float(scale_factor) if scale_factor else None
        self.mode = mode
        self.align_corners = align_corners

    def __call__(self, x):
        assert self.mode == "nearest", "only nearest mode is implemented"
        assert self.scale_factor is not None and self.size is None, (
            "only the scale_factor= path is implemented"
        )
        s = self.scale_factor
        assert float(int(s)) == s, "only integer scale factors are implemented"
        return upsample_nearest(x, int(s))

    def extra_repr(self):
        if self.scale_factor is not None:
            info = "scale_factor=" + str(self.scale_factor)
        else:
            info = "size=" + str(self.size)
        info += ", mode=" + self.mode
        return info


if __name__ == "__main__":
    up = Upsample(scale_factor=2, mode="nearest")

    # Narrow-width path (k-fold for 128-lane output density): W=16 -> Lq=128.
    N, C, H, W = 2, 4, 16, 16
    x = jax.random.normal(jax.random.PRNGKey(0), (N, C, H, W), dtype=jnp.float32)
    out = jax.block_until_ready(up(x))
    ref = jnp.repeat(jnp.repeat(x, 2, axis=2), 2, axis=3)
    assert out.shape == (N, C, 2 * H, 2 * W), out.shape
    assert out.dtype == x.dtype
    # Pure 0/1 gather through a HIGHEST-precision f32 matmul is bit-exact:
    # assert exact equality so any precision/indexing regression is caught.
    assert bool(jnp.array_equal(out, ref)), "narrow-path mismatch vs. reference"

    # Wide-width path (height replicas realized by replicated lane-dense stores).
    x2 = jax.random.normal(jax.random.PRNGKey(1), (1, 2, 8, 64), dtype=jnp.float32)
    out2 = jax.block_until_ready(up(x2))
    ref2 = jnp.repeat(jnp.repeat(x2, 2, axis=2), 2, axis=3)
    assert out2.shape == (1, 2, 16, 128), out2.shape
    assert bool(jnp.array_equal(out2, ref2)), "wide-path mismatch vs. reference"

    print("KERNEL_OK")
</pallas_src>

<mosaic_0001>
module attributes {stable_mosaic.version = 11 : i64} {
  func.func @_upsample_kernel(%arg0: i32, %arg1: memref<16x32xf32, #tpu.memory_space<vmem>>, %arg2: memref<32x128xf32, #tpu.memory_space<vmem>>, %arg3: memref<16x128xf32, #tpu.memory_space<vmem>>) attributes {dimension_semantics = [#tpu.dimension_semantics<parallel>], iteration_bounds = array<i64: 4>, scalar_prefetch = 0 : i64, scratch_operands = 0 : i64, tpu.core_type = #tpu.core_type<tc>, window_params = [{transform_indices = @transform_0, window_bounds = array<i64: 16, 32>}, {pipeline_mode = #tpu.pipeline_mode<synchronous>, transform_indices = @transform_1, window_bounds = array<i64: 32, 128>}, {transform_indices = @transform_2, window_bounds = array<i64: 16, 128>}]} {
    %c0 = arith.constant 0 : index
    %c0_0 = arith.constant 0 : index
    %0 = vector.load %arg2[%c0, %c0_0] : memref<32x128xf32, #tpu.memory_space<vmem>>, vector<32x128xf32>
    %c0_i32 = arith.constant 0 : i32
    %c16_i32 = arith.constant 16 : i32
    %1 = arith.muli %c0_i32, %c16_i32 : i32
    %2 = tpu.assume_multiple %1, 16 : i32
    %3 = arith.index_cast %2 : i32 to index
    %c0_1 = arith.constant 0 : index
    %4 = vector.load %arg1[%3, %c0_1] : memref<16x32xf32, #tpu.memory_space<vmem>>, vector<16x32xf32>
    %cst = arith.constant dense<0.000000e+00> : vector<16x128xf32>
    %5 = tpu.matmul %4, %0, %cst {dimension_numbers = #tpu.dot_dimension_numbers<[1], [0], [0], [1], [0, 0, 1, 1], [], []>, precision = #tpu.contract_precision<fp32>} : vector<16x32xf32>, vector<32x128xf32>, vector<16x128xf32> -> vector<16x128xf32>
    %6 = arith.index_cast %2 : i32 to index
    %c0_2 = arith.constant 0 : index
    %7 = vector.load %arg3[%6, %c0_2] : memref<16x128xf32, #tpu.memory_space<vmem>>, vector<16x128xf32>
    tpu.vector_store %arg3[%6, %c0_2], %5 {strides = array<i32>} : memref<16x128xf32, #tpu.memory_space<vmem>>, vector<16x128xf32>,
    %c1_i32 = arith.constant 1 : i32
    return
  }
  func.func @transform_0(%arg0: i32) -> (i32, i32) {
    %c0_i32 = arith.constant 0 : i32
    %c0_i32_0 = arith.constant 0 : i32
    return %arg0, %c0_i32 : i32, i32
  }
  func.func @transform_1(%arg0: i32) -> (i32, i32) {
    %c0_i32 = arith.constant 0 : i32
    %c0_i32_0 = arith.constant 0 : i32
    %c0_i32_1 = arith.constant 0 : i32
    return %c0_i32, %c0_i32_0 : i32, i32
  }
  func.func @transform_2(%arg0: i32) -> (i32, i32) {
    %c0_i32 = arith.constant 0 : i32
    %c0_i32_0 = arith.constant 0 : i32
    return %arg0, %c0_i32 : i32, i32
  }
}

</mosaic_0001>

<llo_original>
// kernel: tpu_custom_call.1
$region0: #{tpu_custom_call.1}
  #allocation0 [shape = 'u32[]', space=smem, size = 0x4, offset = 0x4, fixed_abs, tag = 'smem constant byte address 0x4 - core index']
  #allocation1 [shape = 'u32[144,128]{1,0:T(1,128)}', space=vmem, size = 0x12000, scoped, tag = 'internal scratch']
  %s0 = inlined_call_operand.vmem [shape: f32[64,32], index: 0, kind: input, shape index: {}]
  %s1 = inlined_call_operand.vmem [shape: f32[32,128], index: 1, kind: input, shape index: {}]
  %s2 = inlined_call_operand.hbm [shape: f32[64,128], index: 2, kind: output, shape index: {}]
  %s3 = sld [smem:[#allocation0]]
  $region41: #{tpu_custom_call.1} parent=0
    _
  %s5 = ssub.s32 1, %s3
  %s6 = scalar_select 0, %s5, %s3
  $region1: #{tpu_custom_call.1} parent=0
    #allocation2 [shape = 'u8[16384]{0}', space=vmem, size = 0x4000, scoped, tag = 'output window, operand 0']
    #allocation3 [shape = 's32[2]{0}', space=sflag, size = 0x8, scoped, tag = 'scoped memory for tpu_custom_call.1']
    %7 = vsyncpa [#allocation3], 0
    %s8 = scalar_lea.sflag [#allocation3], 1
    %9 = vsyncpa %s8, 0
    loop: start=0, step=1, limit=6
    $region2: #{tpu_custom_call.1} parent=1 // loop_pre_header
      _
    $region3: #{tpu_custom_call.1} parent=1 // loop_header
      %s11 = sphi 0, %s15
      %p12 = scmp.ge.s32.totalorder %s11, 6
      %s21 = sphi 0, %s23
      %s24 = sphi 0, %s21
      %s25 = sphi 0, %s24
      %s41 = sphi 0, %s25
      %s45 = sphi 0, %s45
      %s47 = sphi 0, %s45
      %s48 = sphi 0, %s47
      %s62 = sphi 0, %s48
      %s68 = sphi 0, %s70
      %s71 = sphi 0, %s68
      %s72 = sphi 0, %s71
      %s88 = sphi 0, %s72
    $region4: #{tpu_custom_call.1} parent=1 // loop_header_branch
      %14 = sbr.rel (%p12) target = $region8
    $region5: #{tpu_custom_call.1} parent=1 // loop_body
      %s16 = ssub.s32 %s11, 1
      %s17 = ssub.s32 %s11, 2
      %s18 = sadd.s32 %s11, 1
      %s19 = ssub.s32 %s11, %s18
      %p20 = scmp.eq.s32.totalorder %s19, 0
      %s22 = sadd.s32 %s21, 1
      %s23 = scalar_select %p20, %s21, %s22
      %p26 = pneg %p20
      %p27 = scmp.eq.s32.totalorder %s11, 3
      %p28 = por %p26, %p27
      %p29 = scmp.ne.s32.totalorder %s21, %s24
      %p30 = scmp.eq.s32.totalorder %s11, 0
      %p31 = por %p29, %p30
      %p32 = scmp.ne.s32.totalorder %s21, %s24
      %p33 = scmp.eq.s32.totalorder %s16, 3
      %p34 = por %p32, %p33
      %p35 = scmp.ne.s32.totalorder %s24, %s25
      %p36 = scmp.eq.s32.totalorder %s16, 0
      %p37 = por %p35, %p36
      %p38 = scmp.ne.s32.totalorder %s24, %s25
      %p39 = scmp.eq.s32.totalorder %s17, 3
      %p40 = por %p38, %p39
      %p42 = scmp.ne.s32.totalorder %s25, %s41
      %p43 = scmp.eq.s32.totalorder %s17, 0
      %p44 = por %p42, %p43
      %s46 = sadd.s32 %s45, 1
      %p49 = scmp.eq.s32.totalorder %s11, 3
      %p50 = scmp.ne.s32.totalorder %s45, %s47
      %p51 = scmp.eq.s32.totalorder %s11, 0
      %p52 = por %p50, %p51
      %p53 = scmp.ne.s32.totalorder %s45, %s47
      %p54 = scmp.eq.s32.totalorder %s16, 3
      %p55 = por %p53, %p54
      %p56 = scmp.ne.s32.totalorder %s47, %s48
      %p57 = scmp.eq.s32.totalorder %s16, 0
      %p58 = por %p56, %p57
      %p59 = scmp.ne.s32.totalorder %s47, %s48
      %p60 = scmp.eq.s32.totalorder %s17, 3
      %p61 = por %p59, %p60
      %p63 = scmp.ne.s32.totalorder %s48, %s62
      %p64 = scmp.eq.s32.totalorder %s17, 0
      %p65 = por %p63, %p64
      %s66 = ssub.s32 %s11, %s18
      %p67 = scmp.eq.s32.totalorder %s66, 0
      %s69 = sadd.s32 %s68, 1
      %s70 = scalar_select %p67, %s68, %s69
      %p73 = pneg %p67
      %p74 = scmp.eq.s32.totalorder %s11, 3
      %p75 = por %p73, %p74
      %p76 = scmp.ne.s32.totalorder %s68, %s71
      %p77 = scmp.eq.s32.totalorder %s11, 0
      %p78 = por %p76, %p77
      %p79 = scmp.ne.s32.totalorder %s68, %s71
      %p80 = scmp.eq.s32.totalorder %s16, 3
      %p81 = por %p79, %p80
      %p82 = scmp.ne.s32.totalorder %s71, %s72
      %p83 = scmp.eq.s32.totalorder %s16, 0
      %p84 = por %p82, %p83
      %p85 = scmp.ne.s32.totalorder %s71, %s72
      %p86 = scmp.eq.s32.totalorder %s17, 3
      %p87 = por %p85, %p86
      %p89 = scmp.ne.s32.totalorder %s72, %s88
      %p90 = scmp.eq.s32.totalorder %s17, 0
      %p91 = por %p89, %p90
      %p92 = scmp.le.s32.totalorder 1, %s11
      %p93 = scmp.lt.s32.totalorder %s11, 5
      %p94 = pnand %p92, %p93
      %p95 = pneg %p94
      // Predicated region
      $region9: #{tpu_custom_call.1} parent=5 // pred_check
        _
      $region10: #{tpu_custom_call.1} parent=5 // pred_check_branch
        %97 = sbr.rel (%p94) target = $region12
      $region11: #{tpu_custom_call.1} parent=5 // pred_region
        %s98 = ssub.s32 %s11, 1
        // Predicated region
        $region13: #{tpu_custom_call.1} parent=11 // pred_check
          %p99 = pneg %p58
        $region14: #{tpu_custom_call.1} parent=11 // pred_check_branch
          %101 = sbr.rel (%p99) target = $region16
        $region15: #{tpu_custom_call.1} parent=11 // pred_region
          _
        $region16: #{tpu_custom_call.1} parent=11 // pred_fallthru
          _
      $region12: #{tpu_custom_call.1} parent=5 // pred_fallthru
        _
      %p102 = scmp.lt.s32.totalorder %s11, 4
      // Predicated region
      $region17: #{tpu_custom_call.1} parent=5 // pred_check
        %p103 = pneg %p102
      $region18: #{tpu_custom_call.1} parent=5 // pred_check_branch
        %105 = sbr.rel (%p103) target = $region20
      $region19: #{tpu_custom_call.1} parent=5 // pred_region
        // Predicated region
        $region21: #{tpu_custom_call.1} parent=19 // pred_check
          %p106 = pneg %p31
        $region22: #{tpu_custom_call.1} parent=19 // pred_check_branch
          %108 = sbr.rel (%p106) target = $region24
        $region23: #{tpu_custom_call.1} parent=19 // pred_region
          %s109 = smul.u32 2, %s11
          %p110 = scmp.lt.s32.totalorder %s109, 7
          %s111 = scalar_select %p110, %s109, 7
          %s112 = smul.addr %s111, 8
          %s113 = scalar_lea.vmem %s0, %s112
          %s114 = smul.u32 2, %s11
        $region24: #{tpu_custom_call.1} parent=19 // pred_fallthru
          _
      $region20: #{tpu_custom_call.1} parent=5 // pred_fallthru
        _
      %p115 = scmp.le.s32.totalorder 1, %s11
      %p116 = scmp.lt.s32.totalorder %s11, 5
      %p117 = pnand %p115, %p116
      %p118 = pneg %p117
      // Predicated region
      $region25: #{tpu_custom_call.1} parent=5 // pred_check
        _
      $region26: #{tpu_custom_call.1} parent=5 // pred_check_branch
        %120 = sbr.rel (%p117) target = $region28
      $region27: #{tpu_custom_call.1} parent=5 // pred_region
        %s121 = ssub.s32 %s11, 1
        %s122 = smul.u32 2, %s16
        %p123 = scmp.lt.s32.totalorder %s122, 7
        %s124 = scalar_select %p123, %s122, 7
        %s125 = smul.addr %s124, 8
        %s126 = scalar_lea.vmem %s0, %s125
        %p127 = pneg %p37
        %p128 = pneg %p34
        %p129 = pneg %p58
        %p130 = pneg %p55
        %p131 = pneg %p84
        %p132 = pneg %p81
        %s133 = sand.u32 %s71, 1
        %s134 = scalar_lea.sflag [#allocation3], %s133
        %s135 = sand.u32 %s71, 1
        %s136 = smul.addr %s135, 16
        %s137 = scalar_lea.vmem [#allocation2], %s136
        %s138 = smul.u32 2, %s16
        %p139 = scmp.lt.s32.totalorder %s138, 7
        %s140 = scalar_select %p139, %s138, 7
        %s141 = smul.addr %s140, 8
        %s142 = scalar_lea.vmem %s0, %s141
        %s143 = smul.u32 2, %s16
        %s144 = smul.u32 2, %s16
        %v145 = vld [vmem:[%s1] sm:$0xff]
        %v146 = vld [vmem:[%s1 + $0x8] sm:$0xff]
        %v147 = vld [vmem:[%s1 + $0x10] sm:$0xff]
        %v148 = vld [vmem:[%s1 + $0x18] sm:$0xff]
        %v149 = vld [vmem:[%s142] sm:$0xff]
        %v150 = vld [vmem:[%s142 + $0x8] sm:$0xff]
        %vm151 = vcmask 261120
        %v153 = vsel %vm151, %v149, 0
        %v156 = vsel %vm151, %v150, 0
        %158 = vmatprep.subr.mxu0 0.0
        %v159 = vand.u32 %v145, 4294901760
        %160 = vmatpush1.msra.mxu0 %v159
        %161 = vmatprep.subr.mxu0 0.0
        %v162 = vand.u32 %v146, 4294901760
        %163 = vmatpush1.msra.mxu0 %v162
        %164 = vmatprep.subr.mxu0 0.0
        %v165 = vand.u32 %v147, 4294901760
        %166 = vmatpush1.msra.mxu0 %v165
        %167 = vmatprep.subr.mxu0 0.0
        %v168 = vand.u32 %v148, 4294901760
        %169 = vmatpush1.msra.mxu0 %v168
        %170 = vmatprep.subr.mxu0 0.0
        %171 = vmatpush1.msra.mxu0 0.0
        %172 = vmatprep.subr.mxu0 0.0
        %173 = vmatpush1.msra.mxu0 0.0
        %174 = vmatprep.subr.mxu0 0.0
        %175 = vmatpush1.msra.mxu0 0.0
        %176 = vmatprep.subr.mxu0 0.0
        %177 = vmatpush1.msra.mxu0 0.0
        %178 = vmatprep.subr.mxu0 0.0
        %179 = vmatpush1.msra.mxu0 0.0
        %180 = vmatprep.subr.mxu0 0.0
        %181 = vmatpush1.msra.mxu0 0.0
        %182 = vmatprep.subr.mxu0 0.0
        %183 = vmatpush1.msra.mxu0 0.0
        %184 = vmatprep.subr.mxu0 0.0
        %185 = vmatpush1.msra.mxu0 0.0
        %186 = vmatprep.subr.mxu0 0.0
        %187 = vmatpush1.msra.mxu0 0.0
        %188 = vmatprep.subr.mxu0 0.0
        %189 = vmatpush1.msra.mxu0 0.0
        %190 = vmatprep.subr.mxu0 0.0
        %191 = vmatpush1.msra.mxu0 0.0
        %192 = vmatprep.subr.mxu0 0.0
        %193 = vmatpush1.msra.mxu0 0.0
        %194 = vmatprep.subr.mxu0 0.0
        %195 = vmatpush1.msra.mxu0 0.0
        %196 = vmatprep.subr.mxu0 0.0
        %197 = vmatpush1.msra.mxu0 0.0
        %198 = vmatprep.subr.mxu0 0.0
        %199 = vmatpush1.msra.mxu0 0.0
        %200 = vmatprep.subr.mxu0 0.0
        %201 = vmatpush1.msra.mxu0 0.0
        %202 = vmatprep.subr.mxu0 0.0
        %203 = vmatpush1.msra.mxu0 0.0
        %204 = vmatprep.subr.mxu0 0.0
        %205 = vmatpush1.msra.mxu0 0.0
        %206 = vmatprep.subr.mxu0 0.0
        %207 = vmatpush1.msra.mxu0 0.0
        %208 = vmatprep.subr.mxu0 0.0
        %209 = vmatpush1.msra.mxu0 0.0
        %210 = vmatprep.subr.mxu0 0.0
        %211 = vmatpush1.msra.mxu0 0.0
        %212 = vmatprep.subr.mxu0 0.0
        %213 = vmatpush1.msra.mxu0 0.0
        %214 = vmatprep.subr.mxu0 0.0
        %215 = vmatpush1.msra.mxu0 0.0
        %216 = vmatprep.subr.mxu0 0.0
        %217 = vmatpush1.msra.mxu0 0.0
        %218 = vmatprep.subr.mxu0 0.0
        %219 = vmatpush1.msra.mxu0 0.0
        %220 = vmatprep.subr.mxu0 0.0
        %221 = vmatpush1.msra.mxu0 0.0
        %222 = vmatprep.subr.mxu0 0.0
        %223 = vmatpush1.msra.mxu0 0.0
        %224 = vmatprep.subr.mxu0 0.0
        %225 = vmatpush1.msra.mxu0 0.0
        %226 = vmatprep.mubr.f32.mxu0 0.0
        %v227 = vand.u32 %v153, 4294901760
        %v228 = vsub.f32 %v153, %v227
        %v229 = vand.u32 %v228, 4294901760
        %v230 = vsub.f32 %v228, %v229
        %v231 = vand.u32 %v230, 4294901760
        %232 = vmatmul.mubr.f32.gmra.mrb[0].mxu0 %v231
        %v233 = vpop.f32.mrb[0].mxu0
        %v234 = vadd.f32 0.0, %v233
        %v235 = vpop.f32.mrb[0].mxu0
        %236 = vmatprep.mubr.f32.mxu0 0.0
        %v237 = vand.u32 %v156, 4294901760
        %v238 = vsub.f32 %v156, %v237
        %v239 = vand.u32 %v238, 4294901760
        %v240 = vsub.f32 %v238, %v239
        %v241 = vand.u32 %v240, 4294901760
        %242 = vmatmul.mubr.f32.gmra.mrb[0].mxu0 %v241
        %v243 = vpop.f32.mrb[0].mxu0
        %v244 = vadd.f32 0.0, %v243
        %v245 = vpop.f32.mrb[0].mxu0
        %246 = vdwg.mxu0
        %247 = vmatprep.subr.mxu0 0.0
        %v248 = vand.u32 %v145, 4294901760
        %v249 = vsub.f32 %v145, %v248
        %v250 = vand.u32 %v249, 4294901760
        %v251 = vsub.f32 %v249, %v250
        %v252 = vand.u32 %v251, 4294901760
        %253 = vmatpush1.msra.mxu0 %v252
        %254 = vmatprep.subr.mxu0 0.0
        %v255 = vand.u32 %v146, 4294901760
        %v256 = vsub.f32 %v146, %v255
        %v257 = vand.u32 %v256, 4294901760
        %v258 = vsub.f32 %v256, %v257
        %v259 = vand.u32 %v258, 4294901760
        %260 = vmatpush1.msra.mxu0 %v259
        %261 = vmatprep.subr.mxu0 0.0
        %v262 = vand.u32 %v147, 4294901760
        %v263 = vsub.f32 %v147, %v262
        %v264 = vand.u32 %v263, 4294901760
        %v265 = vsub.f32 %v263, %v264
        %v266 = vand.u32 %v265, 4294901760
        %267 = vmatpush1.msra.mxu0 %v266
        %268 = vmatprep.subr.mxu0 0.0
        %v269 = vand.u32 %v148, 4294901760
        %v270 = vsub.f32 %v148, %v269
        %v271 = vand.u32 %v270, 4294901760
        %v272 = vsub.f32 %v270, %v271
        %v273 = vand.u32 %v272, 4294901760
        %274 = vmatpush1.msra.mxu0 %v273
        %275 = vmatprep.subr.mxu0 0.0
        %276 = vmatpush1.msra.mxu0 0.0
        %277 = vmatprep.subr.mxu0 0.0
        %278 = vmatpush1.msra.mxu0 0.0
        %279 = vmatprep.subr.mxu0 0.0
        %280 = vmatpush1.msra.mxu0 0.0
        %281 = vmatprep.subr.mxu0 0.0
        %282 = vmatpush1.msra.mxu0 0.0
        %283 = vmatprep.subr.mxu0 0.0
        %284 = vmatpush1.msra.mxu0 0.0
        %285 = vmatprep.subr.mxu0 0.0
        %286 = vmatpush1.msra.mxu0 0.0
        %287 = vmatprep.subr.mxu0 0.0
        %288 = vmatpush1.msra.mxu0 0.0
        %289 = vmatprep.subr.mxu0 0.0
        %290 = vmatpush1.msra.mxu0 0.0
        %291 = vmatprep.subr.mxu0 0.0
        %292 = vmatpush1.msra.mxu0 0.0
        %293 = vmatprep.subr.mxu0 0.0
        %294 = vmatpush1.msra.mxu0 0.0
        %295 = vmatprep.subr.mxu0 0.0
        %296 = vmatpush1.msra.mxu0 0.0
        %297 = vmatprep.subr.mxu0 0.0
        %298 = vmatpush1.msra.mxu0 0.0
        %299 = vmatprep.subr.mxu0 0.0
        %300 = vmatpush1.msra.mxu0 0.0
        %301 = vmatprep.subr.mxu0 0.0
        %302 = vmatpush1.msra.mxu0 0.0
        %303 = vmatprep.subr.mxu0 0.0
        %304 = vmatpush1.msra.mxu0 0.0
        %305 = vmatprep.subr.mxu0 0.0
        %306 = vmatpush1.msra.mxu0 0.0
        %307 = vmatprep.subr.mxu0 0.0
        %308 = vmatpush1.msra.mxu0 0.0
        %309 = vmatprep.subr.mxu0 0.0
        %310 = vmatpush1.msra.mxu0 0.0
        %311 = vmatprep.subr.mxu0 0.0
        %312 = vmatpush1.msra.mxu0 0.0
        %313 = vmatprep.subr.mxu0 0.0
        %314 = vmatpush1.msra.mxu0 0.0
        %315 = vmatprep.subr.mxu0 0.0
        %316 = vmatpush1.msra.mxu0 0.0
        %317 = vmatprep.subr.mxu0 0.0
        %318 = vmatpush1.msra.mxu0 0.0
        %319 = vmatprep.subr.mxu0 0.0
        %320 = vmatpush1.msra.mxu0 0.0
        %321 = vmatprep.subr.mxu0 0.0
        %322 = vmatpush1.msra.mxu0 0.0
        %323 = vmatprep.subr.mxu0 0.0
        %324 = vmatpush1.msra.mxu0 0.0
        %325 = vmatprep.subr.mxu0 0.0
        %326 = vmatpush1.msra.mxu0 0.0
        %327 = vmatprep.subr.mxu0 0.0
        %328 = vmatpush1.msra.mxu0 0.0
        %329 = vmatprep.subr.mxu0 0.0
        %330 = vmatpush1.msra.mxu0 0.0
        %331 = vmatprep.mubr.f32.mxu0 0.0
        %v332 = vand.u32 %v153, 4294901760
        %333 = vmatmul.mubr.f32.gmra.mrb[0].mxu0 %v332
        %v334 = vpop.f32.mrb[0].mxu0
        %v335 = vadd.f32 %v234, %v334
        %v336 = vpop.f32.mrb[0].mxu0
        %337 = vmatprep.mubr.f32.mxu0 0.0
        %v338 = vand.u32 %v156, 4294901760
        %339 = vmatmul.mubr.f32.gmra.mrb[0].mxu0 %v338
        %v340 = vpop.f32.mrb[0].mxu0
        %v341 = vadd.f32 %v244, %v340
        %v342 = vpop.f32.mrb[0].mxu0
        %343 = vdwg.mxu0
        %344 = vmatprep.subr.mxu0 0.0
        %v345 = vand.u32 %v145, 4294901760
        %v346 = vsub.f32 %v145, %v345
        %347 = vmatpush1.msra.mxu0 %v346
        %348 = vmatprep.subr.mxu0 0.0
        %v349 = vand.u32 %v146, 4294901760
        %v350 = vsub.f32 %v146, %v349
        %351 = vmatpush1.msra.mxu0 %v350
        %352 = vmatprep.subr.mxu0 0.0
        %v353 = vand.u32 %v147, 4294901760
        %v354 = vsub.f32 %v147, %v353
        %355 = vmatpush1.msra.mxu0 %v354
        %356 = vmatprep.subr.mxu0 0.0
        %v357 = vand.u32 %v148, 4294901760
        %v358 = vsub.f32 %v148, %v357
        %359 = vmatpush1.msra.mxu0 %v358
        %360 = vmatprep.subr.mxu0 0.0
        %361 = vmatpush1.msra.mxu0 0.0
        %362 = vmatprep.subr.mxu0 0.0
        %363 = vmatpush1.msra.mxu0 0.0
        %364 = vmatprep.subr.mxu0 0.0
        %365 = vmatpush1.msra.mxu0 0.0
        %366 = vmatprep.subr.mxu0 0.0
        %367 = vmatpush1.msra.mxu0 0.0
        %368 = vmatprep.subr.mxu0 0.0
        %369 = vmatpush1.msra.mxu0 0.0
        %370 = vmatprep.subr.mxu0 0.0
        %371 = vmatpush1.msra.mxu0 0.0
        %372 = vmatprep.subr.mxu0 0.0
        %373 = vmatpush1.msra.mxu0 0.0
        %374 = vmatprep.subr.mxu0 0.0
        %375 = vmatpush1.msra.mxu0 0.0
        %376 = vmatprep.subr.mxu0 0.0
        %377 = vmatpush1.msra.mxu0 0.0
        %378 = vmatprep.subr.mxu0 0.0
        %379 = vmatpush1.msra.mxu0 0.0
        %380 = vmatprep.subr.mxu0 0.0
        %381 = vmatpush1.msra.mxu0 0.0
        %382 = vmatprep.subr.mxu0 0.0
        %383 = vmatpush1.msra.mxu0 0.0
        %384 = vmatprep.subr.mxu0 0.0
        %385 = vmatpush1.msra.mxu0 0.0
        %386 = vmatprep.subr.mxu0 0.0
        %387 = vmatpush1.msra.mxu0 0.0
        %388 = vmatprep.subr.mxu0 0.0
        %389 = vmatpush1.msra.mxu0 0.0
        %390 = vmatprep.subr.mxu0 0.0
        %391 = vmatpush1.msra.mxu0 0.0
        %392 = vmatprep.subr.mxu0 0.0
        %393 = vmatpush1.msra.mxu0 0.0
        %394 = vmatprep.subr.mxu0 0.0
        %395 = vmatpush1.msra.mxu0 0.0
        %396 = vmatprep.subr.mxu0 0.0
        %397 = vmatpush1.msra.mxu0 0.0
        %398 = vmatprep.subr.mxu0 0.0
        %399 = vmatpush1.msra.mxu0 0.0
        %400 = vmatprep.subr.mxu0 0.0
        %401 = vmatpush1.msra.mxu0 0.0
        %402 = vmatprep.subr.mxu0 0.0
        %403 = vmatpush1.msra.mxu0 0.0
        %404 = vmatprep.subr.mxu0 0.0
        %405 = vmatpush1.msra.mxu0 0.0
        %406 = vmatprep.subr.mxu0 0.0
        %407 = vmatpush1.msra.mxu0 0.0
        %408 = vmatprep.subr.mxu0 0.0
        %409 = vmatpush1.msra.mxu0 0.0
        %410 = vmatprep.subr.mxu0 0.0
        %411 = vmatpush1.msra.mxu0 0.0
        %412 = vmatprep.subr.mxu0 0.0
        %413 = vmatpush1.msra.mxu0 0.0
        %414 = vmatprep.subr.mxu0 0.0
        %415 = vmatpush1.msra.mxu0 0.0
        %416 = vmatprep.mubr.f32.mxu0 0.0
        %v417 = vand.u32 %v153, 4294901760
        %v418 = vsub.f32 %v153, %v417
        %419 = vmatmul.mubr.f32.gmra.mrb[0].mxu0 %v418
        %v420 = vpop.f32.mrb[0].mxu0
        %v421 = vadd.f32 %v335, %v420
        %v422 = vpop.f32.mrb[0].mxu0
        %423 = vmatprep.mubr.f32.mxu0 0.0
        %v424 = vand.u32 %v156, 4294901760
        %v425 = vsub.f32 %v156, %v424
        %426 = vmatmul.mubr.f32.gmra.mrb[0].mxu0 %v425
        %v427 = vpop.f32.mrb[0].mxu0
        %v428 = vadd.f32 %v341, %v427
        %v429 = vpop.f32.mrb[0].mxu0
        %430 = vdwg.mxu0
        %431 = vmatprep.subr.mxu0 0.0
        %v432 = vand.u32 %v145, 4294901760
        %433 = vmatpush1.msra.mxu0 %v432
        %434 = vmatprep.subr.mxu0 0.0
        %v435 = vand.u32 %v146, 4294901760
        %436 = vmatpush1.msra.mxu0 %v435
        %437 = vmatprep.subr.mxu0 0.0
        %v438 = vand.u32 %v147, 4294901760
        %439 = vmatpush1.msra.mxu0 %v438
        %440 = vmatprep.subr.mxu0 0.0
        %v441 = vand.u32 %v148, 4294901760
        %442 = vmatpush1.msra.mxu0 %v441
        %443 = vmatprep.subr.mxu0 0.0
        %444 = vmatpush1.msra.mxu0 0.0
        %445 = vmatprep.subr.mxu0 0.0
        %446 = vmatpush1.msra.mxu0 0.0
        %447 = vmatprep.subr.mxu0 0.0
        %448 = vmatpush1.msra.mxu0 0.0
        %449 = vmatprep.subr.mxu0 0.0
        %450 = vmatpush1.msra.mxu0 0.0
        %451 = vmatprep.subr.mxu0 0.0
        %452 = vmatpush1.msra.mxu0 0.0
        %453 = vmatprep.subr.mxu0 0.0
        %454 = vmatpush1.msra.mxu0 0.0
        %455 = vmatprep.subr.mxu0 0.0
        %456 = vmatpush1.msra.mxu0 0.0
        %457 = vmatprep.subr.mxu0 0.0
        %458 = vmatpush1.msra.mxu0 0.0
        %459 = vmatprep.subr.mxu0 0.0
        %460 = vmatpush1.msra.mxu0 0.0
        %461 = vmatprep.subr.mxu0 0.0
        %462 = vmatpush1.msra.mxu0 0.0
        %463 = vmatprep.subr.mxu0 0.0
        %464 = vmatpush1.msra.mxu0 0.0
        %465 = vmatprep.subr.mxu0 0.0
        %466 = vmatpush1.msra.mxu0 0.0
        %467 = vmatprep.subr.mxu0 0.0
        %468 = vmatpush1.msra.mxu0 0.0
        %469 = vmatprep.subr.mxu0 0.0
        %470 = vmatpush1.msra.mxu0 0.0
        %471 = vmatprep.subr.mxu0 0.0
        %472 = vmatpush1.msra.mxu0 0.0
        %473 = vmatprep.subr.mxu0 0.0
        %474 = vmatpush1.msra.mxu0 0.0
        %475 = vmatprep.subr.mxu0 0.0
        %476 = vmatpush1.msra.mxu0 0.0
        %477 = vmatprep.subr.mxu0 0.0
        %478 = vmatpush1.msra.mxu0 0.0
        %479 = vmatprep.subr.mxu0 0.0
        %480 = vmatpush1.msra.mxu0 0.0
        %481 = vmatprep.subr.mxu0 0.0
        %482 = vmatpush1.msra.mxu0 0.0
        %483 = vmatprep.subr.mxu0 0.0
        %484 = vmatpush1.msra.mxu0 0.0
        %485 = vmatprep.subr.mxu0 0.0
        %486 = vmatpush1.msra.mxu0 0.0
        %487 = vmatprep.subr.mxu0 0.0
        %488 = vmatpush1.msra.mxu0 0.0
        %489 = vmatprep.subr.mxu0 0.0
        %490 = vmatpush1.msra.mxu0 0.0
        %491 = vmatprep.subr.mxu0 0.0
        %492 = vmatpush1.msra.mxu0 0.0
        %493 = vmatprep.subr.mxu0 0.0
        %494 = vmatpush1.msra.mxu0 0.0
        %495 = vmatprep.subr.mxu0 0.0
        %496 = vmatpush1.msra.mxu0 0.0
        %497 = vmatprep.subr.mxu0 0.0
        %498 = vmatpush1.msra.mxu0 0.0
        %499 = vmatprep.mubr.f32.mxu0 0.0
        %v500 = vand.u32 %v153, 4294901760
        %v501 = vsub.f32 %v153, %v500
        %v502 = vand.u32 %v501, 4294901760
        %503 = vmatmul.mubr.f32.gmra.mrb[0].mxu0 %v502
        %v504 = vpop.f32.mrb[0].mxu0
        %v505 = vadd.f32 %v421, %v504
        %v506 = vpop.f32.mrb[0].mxu0
        %507 = vmatprep.mubr.f32.mxu0 0.0
        %v508 = vand.u32 %v156, 4294901760
        %v509 = vsub.f32 %v156, %v508
        %v510 = vand.u32 %v509, 4294901760
        %511 = vmatmul.mubr.f32.gmra.mrb[0].mxu0 %v510
        %v512 = vpop.f32.mrb[0].mxu0
        %v513 = vadd.f32 %v428, %v512
        %v514 = vpop.f32.mrb[0].mxu0
        %515 = vdwg.mxu0
        %516 = vmatprep.subr.mxu0 0.0
        %v517 = vand.u32 %v145, 4294901760
        %v518 = vsub.f32 %v145, %v517
        %v519 = vand.u32 %v518, 4294901760
        %520 = vmatpush1.msra.mxu0 %v519
        %521 = vmatprep.subr.mxu0 0.0
        %v522 = vand.u32 %v146, 4294901760
        %v523 = vsub.f32 %v146, %v522
        %v524 = vand.u32 %v523, 4294901760
        %525 = vmatpush1.msra.mxu0 %v524
        %526 = vmatprep.subr.mxu0 0.0
        %v527 = vand.u32 %v147, 4294901760
        %v528 = vsub.f32 %v147, %v527
        %v529 = vand.u32 %v528, 4294901760
        %530 = vmatpush1.msra.mxu0 %v529
        %531 = vmatprep.subr.mxu0 0.0
        %v532 = vand.u32 %v148, 4294901760
        %v533 = vsub.f32 %v148, %v532
        %v534 = vand.u32 %v533, 4294901760
        %535 = vmatpush1.msra.mxu0 %v534
        %536 = vmatprep.subr.mxu0 0.0
        %537 = vmatpush1.msra.mxu0 0.0
        %538 = vmatprep.subr.mxu0 0.0
        %539 = vmatpush1.msra.mxu0 0.0
        %540 = vmatprep.subr.mxu0 0.0
        %541 = vmatpush1.msra.mxu0 0.0
        %542 = vmatprep.subr.mxu0 0.0
        %543 = vmatpush1.msra.mxu0 0.0
        %544 = vmatprep.subr.mxu0 0.0
        %545 = vmatpush1.msra.mxu0 0.0
        %546 = vmatprep.subr.mxu0 0.0
        %547 = vmatpush1.msra.mxu0 0.0
        %548 = vmatprep.subr.mxu0 0.0
        %549 = vmatpush1.msra.mxu0 0.0
        %550 = vmatprep.subr.mxu0 0.0
        %551 = vmatpush1.msra.mxu0 0.0
        %552 = vmatprep.subr.mxu0 0.0
        %553 = vmatpush1.msra.mxu0 0.0
        %554 = vmatprep.subr.mxu0 0.0
        %555 = vmatpush1.msra.mxu0 0.0
        %556 = vmatprep.subr.mxu0 0.0
        %557 = vmatpush1.msra.mxu0 0.0
        %558 = vmatprep.subr.mxu0 0.0
        %559 = vmatpush1.msra.mxu0 0.0
        %560 = vmatprep.subr.mxu0 0.0
        %561 = vmatpush1.msra.mxu0 0.0
        %562 = vmatprep.subr.mxu0 0.0
        %563 = vmatpush1.msra.mxu0 0.0
        %564 = vmatprep.subr.mxu0 0.0
        %565 = vmatpush1.msra.mxu0 0.0
        %566 = vmatprep.subr.mxu0 0.0
        %567 = vmatpush1.msra.mxu0 0.0
        %568 = vmatprep.subr.mxu0 0.0
        %569 = vmatpush1.msra.mxu0 0.0
        %570 = vmatprep.subr.mxu0 0.0
        %571 = vmatpush1.msra.mxu0 0.0
        %572 = vmatprep.subr.mxu0 0.0
        %573 = vmatpush1.msra.mxu0 0.0
        %574 = vmatprep.subr.mxu0 0.0
        %575 = vmatpush1.msra.mxu0 0.0
        %576 = vmatprep.subr.mxu0 0.0
        %577 = vmatpush1.msra.mxu0 0.0
        %578 = vmatprep.subr.mxu0 0.0
        %579 = vmatpush1.msra.mxu0 0.0
        %580 = vmatprep.subr.mxu0 0.0
        %581 = vmatpush1.msra.mxu0 0.0
        %582 = vmatprep.subr.mxu0 0.0
        %583 = vmatpush1.msra.mxu0 0.0
        %584 = vmatprep.subr.mxu0 0.0
        %585 = vmatpush1.msra.mxu0 0.0
        %586 = vmatprep.subr.mxu0 0.0
        %587 = vmatpush1.msra.mxu0 0.0
        %588 = vmatprep.subr.mxu0 0.0
        %589 = vmatpush1.msra.mxu0 0.0
        %590 = vmatprep.subr.mxu0 0.0
        %591 = vmatpush1.msra.mxu0 0.0
        %592 = vmatprep.mubr.f32.mxu0 0.0
        %v593 = vand.u32 %v153, 4294901760
        %594 = vmatmul.mubr.f32.gmra.mrb[0].mxu0 %v593
        %v595 = vpop.f32.mrb[0].mxu0
        %v596 = vadd.f32 %v505, %v595
        %v597 = vpop.f32.mrb[0].mxu0
        %598 = vmatprep.mubr.f32.mxu0 0.0
        %v599 = vand.u32 %v156, 4294901760
        %600 = vmatmul.mubr.f32.gmra.mrb[0].mxu0 %v599
        %v601 = vpop.f32.mrb[0].mxu0
        %v602 = vadd.f32 %v513, %v601
        %v603 = vpop.f32.mrb[0].mxu0
        %604 = vdwg.mxu0
        %605 = vmatprep.subr.mxu0 0.0
        %v606 = vand.u32 %v145, 4294901760
        %607 = vmatpush1.msra.mxu0 %v606
        %608 = vmatprep.subr.mxu0 0.0
        %v609 = vand.u32 %v146, 4294901760
        %610 = vmatpush1.msra.mxu0 %v609
        %611 = vmatprep.subr.mxu0 0.0
        %v612 = vand.u32 %v147, 4294901760
        %613 = vmatpush1.msra.mxu0 %v612
        %614 = vmatprep.subr.mxu0 0.0
        %v615 = vand.u32 %v148, 4294901760
        %616 = vmatpush1.msra.mxu0 %v615
        %617 = vmatprep.subr.mxu0 0.0
        %618 = vmatpush1.msra.mxu0 0.0
        %619 = vmatprep.subr.mxu0 0.0
        %620 = vmatpush1.msra.mxu0 0.0
        %621 = vmatprep.subr.mxu0 0.0
        %622 = vmatpush1.msra.mxu0 0.0
        %623 = vmatprep.subr.mxu0 0.0
        %624 = vmatpush1.msra.mxu0 0.0
        %625 = vmatprep.subr.mxu0 0.0
        %626 = vmatpush1.msra.mxu0 0.0
        %627 = vmatprep.subr.mxu0 0.0
        %628 = vmatpush1.msra.mxu0 0.0
        %629 = vmatprep.subr.mxu0 0.0
        %630 = vmatpush1.msra.mxu0 0.0
        %631 = vmatprep.subr.mxu0 0.0
        %632 = vmatpush1.msra.mxu0 0.0
        %633 = vmatprep.subr.mxu0 0.0
        %634 = vmatpush1.msra.mxu0 0.0
        %635 = vmatprep.subr.mxu0 0.0
        %636 = vmatpush1.msra.mxu0 0.0
        %637 = vmatprep.subr.mxu0 0.0
        %638 = vmatpush1.msra.mxu0 0.0
        %639 = vmatprep.subr.mxu0 0.0
        %640 = vmatpush1.msra.mxu0 0.0
        %641 = vmatprep.subr.mxu0 0.0
        %642 = vmatpush1.msra.mxu0 0.0
        %643 = vmatprep.subr.mxu0 0.0
        %644 = vmatpush1.msra.mxu0 0.0
        %645 = vmatprep.subr.mxu0 0.0
        %646 = vmatpush1.msra.mxu0 0.0
        %647 = vmatprep.subr.mxu0 0.0
        %648 = vmatpush1.msra.mxu0 0.0
        %649 = vmatprep.subr.mxu0 0.0
        %650 = vmatpush1.msra.mxu0 0.0
        %651 = vmatprep.subr.mxu0 0.0
        %652 = vmatpush1.msra.mxu0 0.0
        %653 = vmatprep.subr.mxu0 0.0
        %654 = vmatpush1.msra.mxu0 0.0
        %655 = vmatprep.subr.mxu0 0.0
        %656 = vmatpush1.msra.mxu0 0.0
        %657 = vmatprep.subr.mxu0 0.0
        %658 = vmatpush1.msra.mxu0 0.0
        %659 = vmatprep.subr.mxu0 0.0
        %660 = vmatpush1.msra.mxu0 0.0
        %661 = vmatprep.subr.mxu0 0.0
        %662 = vmatpush1.msra.mxu0 0.0
        %663 = vmatprep.subr.mxu0 0.0
        %664 = vmatpush1.msra.mxu0 0.0
        %665 = vmatprep.subr.mxu0 0.0
        %666 = vmatpush1.msra.mxu0 0.0
        %667 = vmatprep.subr.mxu0 0.0
        %668 = vmatpush1.msra.mxu0 0.0
        %669 = vmatprep.subr.mxu0 0.0
        %670 = vmatpush1.msra.mxu0 0.0
        %671 = vmatprep.subr.mxu0 0.0
        %672 = vmatpush1.msra.mxu0 0.0
        %673 = vmatprep.mubr.f32.mxu0 0.0
        %v674 = vand.u32 %v153, 4294901760
        %675 = vmatmul.mubr.f32.gmra.mrb[0].mxu0 %v674
        %v676 = vpop.f32.mrb[0].mxu0
        %v677 = vadd.f32 %v596, %v676
        %v678 = vpop.f32.mrb[0].mxu0
        %679 = vmatprep.mubr.f32.mxu0 0.0
        %v680 = vand.u32 %v156, 4294901760
        %681 = vmatmul.mubr.f32.gmra.mrb[0].mxu0 %v680
        %v682 = vpop.f32.mrb[0].mxu0
        %v683 = vadd.f32 %v602, %v682
        %v684 = vpop.f32.mrb[0].mxu0
        %685 = vdwg.mxu0
        %686 = vst [vmem:[%s137] sm:$0xff] %v677
        %687 = vst [vmem:[%s137 + $0x8] sm:$0xff] %v683
        %s688 = sand.u32 %s71, 1
        %s689 = scalar_lea.sflag [#allocation3], %s688
        %s690 = sand.u32 %s71, 1
        %s691 = smul.addr %s690, 16
        %s692 = scalar_lea.vmem [#allocation2], %s691
        // Predicated region
        $region29: #{tpu_custom_call.1} parent=27 // pred_check
          %p693 = pneg %p81
        $region30: #{tpu_custom_call.1} parent=27 // pred_check_branch
          %695 = sbr.rel (%p693) target = $region32
        $region31: #{tpu_custom_call.1} parent=27 // pred_region
          %s696 = smul.u32 2, %s16
          %s698 = ssub.s32 256, 256
          %699 = vsyncadd %s689, %s698
          %s700 = smul.addr %s696, 128
          %s701 = scalar_lea.hbm %s2, %s700
          %s702 = sshll.u32 %s692, 4
          %s703 = int_to_ptr.vmem [resolvable:$true] %s702
          %708 = dma.vmem_to_hbm [thread:$0]  %s703, 256, %s701, %s689, 128, 128, 8
        $region32: #{tpu_custom_call.1} parent=27 // pred_fallthru
          _
      $region28: #{tpu_custom_call.1} parent=5 // pred_fallthru
        _
      %p709 = scmp.le.s32.totalorder 2, %s11
      // Predicated region
      $region33: #{tpu_custom_call.1} parent=5 // pred_check
        %p710 = pneg %p709
      $region34: #{tpu_custom_call.1} parent=5 // pred_check_branch
        %712 = sbr.rel (%p710) target = $region36
      $region35: #{tpu_custom_call.1} parent=5 // pred_region
        %s713 = ssub.s32 %s11, 2
        // Predicated region
        $region37: #{tpu_custom_call.1} parent=35 // pred_check
          %p714 = pneg %p87
        $region38: #{tpu_custom_call.1} parent=35 // pred_check_branch
          %716 = sbr.rel (%p714) target = $region40
        $region39: #{tpu_custom_call.1} parent=35 // pred_region
          %s717 = sand.u32 %s72, 1
          %s718 = scalar_lea.sflag [#allocation3], %s717
          %s719 = sand.u32 %s72, 1
          %s720 = smul.addr %s719, 16
          %s721 = scalar_lea.vmem [#allocation2], %s720
          %722 = dma.done %s718, 256
        $region40: #{tpu_custom_call.1} parent=35 // pred_fallthru
          _
      $region36: #{tpu_custom_call.1} parent=5 // pred_fallthru
        _
    $region6: #{tpu_custom_call.1} parent=1 // loop_footer
      %s15 = sadd.s32 1, %s11
    $region7: #{tpu_custom_call.1} parent=1 // loop_footer_branch
      %10 = sbr.rel target = $region3
    $region8: #{tpu_custom_call.1} parent=1 // loop_exit
      _
    %723 = vsyncpa [#allocation3], 1
    %s724 = scalar_lea.sflag [#allocation3], 1
    %725 = vsyncpa %s724, 1

</llo_original>
